<compile_context>
chip_gen: v5e
topology: v5e:2x2
jax: 0.10.0
libtpu: 0.0.40
codegen_flags: <defaults>
</compile_context>

<pallas_src>
import jax
import jax.numpy as jnp
from jax import lax
from jax.experimental import pallas as pl
from jax.experimental.pallas import tpu as pltpu
from functools import partial


def mha_kernel(q_ref, k_ref, v_ref, bias_ref, w_qkv_ref, b_qkv_ref, wo_ref, bo_ref,
               out_ref, *, num_heads, dim_head):
    f32 = jnp.float32
    q2d = q_ref[...]          # (B*Lq, D)
    k2d = k_ref[...]          # (B*Lk, D)
    v2d = v_ref[...]          # (B*Lk, D)
    bias = bias_ref[...]      # (B*Lq, B*Lk) additive mask bias (block-diag over batch)

    rows = q2d.shape[0]
    dim_model = wo_ref.shape[1]

    acc = jnp.zeros((rows, dim_model), f32)

    for h in range(num_heads):  # static unroll over heads (H=4)
        # Per-head projections (Wq already carries the 1/temperature scale).
        qh = jnp.dot(q2d, w_qkv_ref[0, h], preferred_element_type=f32) + b_qkv_ref[0, h]
        kh = jnp.dot(k2d, w_qkv_ref[1, h], preferred_element_type=f32) + b_qkv_ref[1, h]
        vh = jnp.dot(v2d, w_qkv_ref[2, h], preferred_element_type=f32) + b_qkv_ref[2, h]

        # Scores: contract last dims directly (no explicit transpose of kh).
        s = lax.dot_general(qh, kh, (((1,), (1,)), ((), ())),
                            preferred_element_type=f32)
        s = s + bias

        # Softmax along the key axis; masked / cross-batch entries underflow to exactly 0.
        mx = jnp.max(s, axis=-1, keepdims=True)
        p = jnp.exp(s - mx)
        l = jnp.sum(p, axis=-1, keepdims=True)
        p = p * pl.reciprocal(l, approx=True)

        o_h = jnp.dot(p, vh, preferred_element_type=f32)          # (B*Lq, dh)

        # Accumulate the final projection: sublane-aligned row slice of Wo, no lane concat.
        wo_h = wo_ref[pl.ds(h * dim_head, dim_head), :]           # (dh, D)
        acc = acc + jnp.dot(o_h, wo_h, preferred_element_type=f32)

    out_ref[...] = (acc + bo_ref[...]).astype(out_ref.dtype)


def multi_head_attention(q, k, v, mask, params, *, num_heads):
    B, Lq, D = q.shape
    _, Lk, _ = k.shape
    dh = D // num_heads
    temperature = float(D) ** 0.5  # matches the PyTorch module: sqrt(dim_model)

    # Fold the 1/temperature score scaling into the Q projection (host-side, one-time).
    wq = params["wq"] / temperature
    bq = params["bq"] / temperature

    def split_w(w):   # (D, D) -> (H, D, dh)
        return w.reshape(D, num_heads, dh).transpose(1, 0, 2)

    def split_b(b):   # (1, D) -> (H, 1, dh)
        return b.reshape(1, num_heads, dh).transpose(1, 0, 2)

    w_qkv = jnp.stack([split_w(wq), split_w(params["wk"]), split_w(params["wv"])])  # (3,H,D,dh)
    b_qkv = jnp.stack([split_b(bq), split_b(params["bk"]), split_b(params["bv"])])  # (3,H,1,dh)

    # Fold batch into the row (sublane) dimension.
    q2d = q.reshape(B * Lq, D)
    k2d = k.reshape(B * Lk, D)
    v2d = v.reshape(B * Lk, D)

    # Additive mask bias, block-diagonal over the folded batch: cross-batch score entries
    # get a large finite negative and contribute exactly 0 after softmax.
    NEG = jnp.float32(-1e30)
    intra = jnp.where(mask.astype(bool), NEG, jnp.float32(0.0))        # (B, Lq, Lk)
    same_batch = jnp.eye(B, dtype=bool)                                # (B, B)
    full_bias = jnp.where(same_batch[:, None, :, None],
                          intra[:, :, None, :], NEG)                   # (B, Lq, B, Lk)
    full_bias = full_bias.reshape(B * Lq, B * Lk).astype(jnp.float32)

    kernel = partial(mha_kernel, num_heads=num_heads, dim_head=dh)

    out2d = pl.pallas_call(
        kernel,
        out_shape=jax.ShapeDtypeStruct((B * Lq, D), q.dtype),
        grid=(1,),  # collapsed batch grid: whole problem in one step (see header note re: v7x)
        in_specs=[
            pl.BlockSpec((B * Lq, D), lambda i: (0, 0)),
            pl.BlockSpec((B * Lk, D), lambda i: (0, 0)),
            pl.BlockSpec((B * Lk, D), lambda i: (0, 0)),
            pl.BlockSpec((B * Lq, B * Lk), lambda i: (0, 0)),
            pl.BlockSpec((3, num_heads, D, dh), lambda i: (0, 0, 0, 0)),
            pl.BlockSpec((3, num_heads, 1, dh), lambda i: (0, 0, 0, 0)),
            pl.BlockSpec((D, D), lambda i: (0, 0)),
            pl.BlockSpec((1, D), lambda i: (0, 0)),
        ],
        out_specs=pl.BlockSpec((B * Lq, D), lambda i: (0, 0)),
        compiler_params=pltpu.CompilerParams(dimension_semantics=("arbitrary",)),
    )(q2d, k2d, v2d, full_bias, w_qkv, b_qkv, params["wo"], params["bo"])

    return out2d.reshape(B, Lq, D)


def reference_mha(q, k, v, mask, params, *, num_heads):
    # Pure-JAX reference replicating the PyTorch module (eval mode).
    B, Lq, D = q.shape
    _, Lk, _ = k.shape
    dh = D // num_heads
    temp = float(D) ** 0.5

    def proj(x, w, b):
        return x @ w + b[0]

    qp = proj(q, params["wq"], params["bq"]).reshape(B, Lq, num_heads, dh).transpose(0, 2, 1, 3)
    kp = proj(k, params["wk"], params["bk"]).reshape(B, Lk, num_heads, dh).transpose(0, 2, 1, 3)
    vp = proj(v, params["wv"], params["bv"]).reshape(B, Lk, num_heads, dh).transpose(0, 2, 1, 3)

    attn = jnp.einsum("bhqd,bhkd->bhqk", qp, kp) / temp
    attn = jnp.where(mask[:, None, :, :], -jnp.inf, attn)
    attn = jax.nn.softmax(attn, axis=-1)
    out = jnp.einsum("bhqk,bhkd->bhqd", attn, vp)
    out = out.transpose(0, 2, 1, 3).reshape(B, Lq, D)
    return proj(out, params["wo"], params["bo"])


if __name__ == "__main__":
    B, L, D, H = 2, 8, 32, 4  # batch, seq, dim_model, num_heads

    key = jax.random.PRNGKey(0)
    ks = jax.random.split(key, 12)

    # Deterministic parameter init (weights stored as (in, out), biases as (1, out)).
    scale = 1.0 / (D ** 0.5)
    params = {
        "wq": jax.random.uniform(ks[0], (D, D), jnp.float32, -scale, scale),
        "bq": jax.random.uniform(ks[1], (1, D), jnp.float32, -scale, scale),
        "wk": jax.random.uniform(ks[2], (D, D), jnp.float32, -scale, scale),
        "bk": jax.random.uniform(ks[3], (1, D), jnp.float32, -scale, scale),
        "wv": jax.random.uniform(ks[4], (D, D), jnp.float32, -scale, scale),
        "bv": jax.random.uniform(ks[5], (1, D), jnp.float32, -scale, scale),
        "wo": jax.random.uniform(ks[6], (D, D), jnp.float32, -scale, scale),
        "bo": jax.random.uniform(ks[7], (1, D), jnp.float32, -scale, scale),
    }

    q = jax.random.normal(ks[8], (B, L, D), jnp.float32)
    k = jax.random.normal(ks[9], (B, L, D), jnp.float32)
    v = jax.random.normal(ks[10], (B, L, D), jnp.float32)
    # Causal-style mask: True above the diagonal => masked (no fully-masked rows).
    mask = jnp.broadcast_to(
        jnp.triu(jnp.ones((L, L), dtype=bool), k=1)[None, :, :], (B, L, L))

    out = multi_head_attention(q, k, v, mask, params, num_heads=H)
    out = jax.block_until_ready(out)

    ref = reference_mha(q, k, v, mask, params, num_heads=H)
    assert out.shape == (B, L, D)
    # Tolerance accounts for the approx (EUP) reciprocal in the softmax normalization.
    assert jnp.allclose(out, ref, atol=2e-3, rtol=2e-3), "mismatch vs JAX reference"

    print("KERNEL_OK")
</pallas_src>

<mosaic_0001>
module attributes {stable_mosaic.version = 11 : i64} {
  func.func @mha_kernel(%arg0: i32, %arg1: memref<16x32xf32, #tpu.memory_space<vmem>>, %arg2: memref<16x32xf32, #tpu.memory_space<vmem>>, %arg3: memref<16x32xf32, #tpu.memory_space<vmem>>, %arg4: memref<16x16xf32, #tpu.memory_space<vmem>>, %arg5: memref<3x4x32x8xf32, #tpu.memory_space<vmem>>, %arg6: memref<3x4x1x8xf32, #tpu.memory_space<vmem>>, %arg7: memref<32x32xf32, #tpu.memory_space<vmem>>, %arg8: memref<1x32xf32, #tpu.memory_space<vmem>>, %arg9: memref<16x32xf32, #tpu.memory_space<vmem>>) attributes {dimension_semantics = [#tpu.dimension_semantics<arbitrary>], iteration_bounds = array<i64: 1>, scalar_prefetch = 0 : i64, scratch_operands = 0 : i64, tpu.core_type = #tpu.core_type<tc>, window_params = [{pipeline_mode = #tpu.pipeline_mode<synchronous>, transform_indices = @transform_0, window_bounds = array<i64: 16, 32>}, {pipeline_mode = #tpu.pipeline_mode<synchronous>, transform_indices = @transform_1, window_bounds = array<i64: 16, 32>}, {pipeline_mode = #tpu.pipeline_mode<synchronous>, transform_indices = @transform_2, window_bounds = array<i64: 16, 32>}, {pipeline_mode = #tpu.pipeline_mode<synchronous>, transform_indices = @transform_3, window_bounds = array<i64: 16, 16>}, {pipeline_mode = #tpu.pipeline_mode<synchronous>, transform_indices = @transform_4, window_bounds = array<i64: 3, 4, 32, 8>}, {pipeline_mode = #tpu.pipeline_mode<synchronous>, transform_indices = @transform_5, window_bounds = array<i64: 3, 4, 1, 8>}, {pipeline_mode = #tpu.pipeline_mode<synchronous>, transform_indices = @transform_6, window_bounds = array<i64: 32, 32>}, {pipeline_mode = #tpu.pipeline_mode<synchronous>, transform_indices = @transform_7, window_bounds = array<i64: 1, 32>}, {pipeline_mode = #tpu.pipeline_mode<synchronous>, transform_indices = @transform_8, window_bounds = array<i64: 16, 32>}]} {
    %c0 = arith.constant 0 : index
    %c0_0 = arith.constant 0 : index
    %0 = vector.load %arg1[%c0, %c0_0] : memref<16x32xf32, #tpu.memory_space<vmem>>, vector<16x32xf32>
    %c0_1 = arith.constant 0 : index
    %c0_2 = arith.constant 0 : index
    %1 = vector.load %arg2[%c0_1, %c0_2] : memref<16x32xf32, #tpu.memory_space<vmem>>, vector<16x32xf32>
    %c0_3 = arith.constant 0 : index
    %c0_4 = arith.constant 0 : index
    %2 = vector.load %arg3[%c0_3, %c0_4] : memref<16x32xf32, #tpu.memory_space<vmem>>, vector<16x32xf32>
    %c0_5 = arith.constant 0 : index
    %c0_6 = arith.constant 0 : index
    %3 = vector.load %arg4[%c0_5, %c0_6] : memref<16x16xf32, #tpu.memory_space<vmem>>, vector<16x16xf32>
    %cst = arith.constant 0.000000e+00 : f32
    %4 = vector.broadcast %cst : f32 to vector<16x32xf32>
    %c0_7 = arith.constant 0 : index
    %c0_8 = arith.constant 0 : index
    %c0_9 = arith.constant 0 : index
    %c0_10 = arith.constant 0 : index
    %5 = vector.load %arg5[%c0_7, %c0_8, %c0_9, %c0_10] : memref<3x4x32x8xf32, #tpu.memory_space<vmem>>, vector<1x1x32x8xf32>
    %6 = vector.shape_cast %5 : vector<1x1x32x8xf32> to vector<32x8xf32>
    %cst_11 = arith.constant dense<0.000000e+00> : vector<16x8xf32>
    %7 = tpu.matmul %0, %6, %cst_11 {dimension_numbers = #tpu.dot_dimension_numbers<[1], [0], [0], [1], [0, 0, 1, 1], [], []>} : vector<16x32xf32>, vector<32x8xf32>, vector<16x8xf32> -> vector<16x8xf32>
    %c0_12 = arith.constant 0 : index
    %c0_13 = arith.constant 0 : index
    %c0_14 = arith.constant 0 : index
    %c0_15 = arith.constant 0 : index
    %8 = vector.load %arg6[%c0_12, %c0_13, %c0_14, %c0_15] : memref<3x4x1x8xf32, #tpu.memory_space<vmem>>, vector<1x1x1x8xf32>
    %9 = vector.shape_cast %8 : vector<1x1x1x8xf32> to vector<1x8xf32>
    %10 = vector.broadcast %9 : vector<1x8xf32> to vector<16x8xf32>
    %11 = arith.addf %7, %10 : vector<16x8xf32>
    %c1 = arith.constant 1 : index
    %c0_16 = arith.constant 0 : index
    %c0_17 = arith.constant 0 : index
    %c0_18 = arith.constant 0 : index
    %12 = vector.load %arg5[%c1, %c0_16, %c0_17, %c0_18] : memref<3x4x32x8xf32, #tpu.memory_space<vmem>>, vector<1x1x32x8xf32>
    %13 = vector.shape_cast %12 : vector<1x1x32x8xf32> to vector<32x8xf32>
    %cst_19 = arith.constant dense<0.000000e+00> : vector<16x8xf32>
    %14 = tpu.matmul %1, %13, %cst_19 {dimension_numbers = #tpu.dot_dimension_numbers<[1], [0], [0], [1], [0, 0, 1, 1], [], []>} : vector<16x32xf32>, vector<32x8xf32>, vector<16x8xf32> -> vector<16x8xf32>
    %c1_20 = arith.constant 1 : index
    %c0_21 = arith.constant 0 : index
    %c0_22 = arith.constant 0 : index
    %c0_23 = arith.constant 0 : index
    %15 = vector.load %arg6[%c1_20, %c0_21, %c0_22, %c0_23] : memref<3x4x1x8xf32, #tpu.memory_space<vmem>>, vector<1x1x1x8xf32>
    %16 = vector.shape_cast %15 : vector<1x1x1x8xf32> to vector<1x8xf32>
    %17 = vector.broadcast %16 : vector<1x8xf32> to vector<16x8xf32>
    %18 = arith.addf %14, %17 : vector<16x8xf32>
    %c2 = arith.constant 2 : index
    %c0_24 = arith.constant 0 : index
    %c0_25 = arith.constant 0 : index
    %c0_26 = arith.constant 0 : index
    %19 = vector.load %arg5[%c2, %c0_24, %c0_25, %c0_26] : memref<3x4x32x8xf32, #tpu.memory_space<vmem>>, vector<1x1x32x8xf32>
    %20 = vector.shape_cast %19 : vector<1x1x32x8xf32> to vector<32x8xf32>
    %cst_27 = arith.constant dense<0.000000e+00> : vector<16x8xf32>
    %21 = tpu.matmul %2, %20, %cst_27 {dimension_numbers = #tpu.dot_dimension_numbers<[1], [0], [0], [1], [0, 0, 1, 1], [], []>} : vector<16x32xf32>, vector<32x8xf32>, vector<16x8xf32> -> vector<16x8xf32>
    %c2_28 = arith.constant 2 : index
    %c0_29 = arith.constant 0 : index
    %c0_30 = arith.constant 0 : index
    %c0_31 = arith.constant 0 : index
    %22 = vector.load %arg6[%c2_28, %c0_29, %c0_30, %c0_31] : memref<3x4x1x8xf32, #tpu.memory_space<vmem>>, vector<1x1x1x8xf32>
    %23 = vector.shape_cast %22 : vector<1x1x1x8xf32> to vector<1x8xf32>
    %24 = vector.broadcast %23 : vector<1x8xf32> to vector<16x8xf32>
    %25 = arith.addf %21, %24 : vector<16x8xf32>
    %cst_32 = arith.constant dense<0.000000e+00> : vector<16x16xf32>
    %26 = tpu.matmul %11, %18, %cst_32 {dimension_numbers = #tpu.dot_dimension_numbers<[1], [1], [0], [0], [0, 0, 1, 0], [], []>} : vector<16x8xf32>, vector<16x8xf32>, vector<16x16xf32> -> vector<16x16xf32>
    %27 = arith.addf %26, %3 : vector<16x16xf32>
    %cst_33 = arith.constant dense<0xFF800000> : vector<16xf32>
    %28 = vector.multi_reduction <maximumf>, %27, %cst_33 [1] : vector<16x16xf32> to vector<16xf32>
    %29 = vector.shape_cast %28 : vector<16xf32> to vector<16x1xf32>
    %30 = vector.broadcast %29 : vector<16x1xf32> to vector<16x16xf32>
    %31 = arith.subf %27, %30 : vector<16x16xf32>
    %32 = math.exp %31 : vector<16x16xf32>
    %cst_34 = arith.constant dense<0.000000e+00> : vector<16xf32>
    %33 = vector.multi_reduction <add>, %32, %cst_34 [1] : vector<16x16xf32> to vector<16xf32>
    %34 = vector.shape_cast %33 : vector<16xf32> to vector<16x1xf32>
    %35 = tpu.reciprocal %34 {approx = true} : vector<16x1xf32> -> vector<16x1xf32>
    %36 = vector.broadcast %35 : vector<16x1xf32> to vector<16x16xf32>
    %37 = arith.mulf %32, %36 : vector<16x16xf32>
    %cst_35 = arith.constant dense<0.000000e+00> : vector<16x8xf32>
    %38 = tpu.matmul %37, %25, %cst_35 {dimension_numbers = #tpu.dot_dimension_numbers<[1], [0], [0], [1], [0, 0, 1, 1], [], []>} : vector<16x16xf32>, vector<16x8xf32>, vector<16x8xf32> -> vector<16x8xf32>
    %c0_36 = arith.constant 0 : index
    %c0_37 = arith.constant 0 : index
    %39 = vector.load %arg7[%c0_36, %c0_37] : memref<32x32xf32, #tpu.memory_space<vmem>>, vector<8x32xf32>
    %cst_38 = arith.constant dense<0.000000e+00> : vector<16x32xf32>
    %40 = tpu.matmul %38, %39, %cst_38 {dimension_numbers = #tpu.dot_dimension_numbers<[1], [0], [0], [1], [0, 0, 1, 1], [], []>} : vector<16x8xf32>, vector<8x32xf32>, vector<16x32xf32> -> vector<16x32xf32>
    %41 = arith.addf %4, %40 : vector<16x32xf32>
    %c0_39 = arith.constant 0 : index
    %c1_40 = arith.constant 1 : index
    %c0_41 = arith.constant 0 : index
    %c0_42 = arith.constant 0 : index
    %42 = vector.load %arg5[%c0_39, %c1_40, %c0_41, %c0_42] : memref<3x4x32x8xf32, #tpu.memory_space<vmem>>, vector<1x1x32x8xf32>
    %43 = vector.shape_cast %42 : vector<1x1x32x8xf32> to vector<32x8xf32>
    %cst_43 = arith.constant dense<0.000000e+00> : vector<16x8xf32>
    %44 = tpu.matmul %0, %43, %cst_43 {dimension_numbers = #tpu.dot_dimension_numbers<[1], [0], [0], [1], [0, 0, 1, 1], [], []>} : vector<16x32xf32>, vector<32x8xf32>, vector<16x8xf32> -> vector<16x8xf32>
    %c0_44 = arith.constant 0 : index
    %c1_45 = arith.constant 1 : index
    %c0_46 = arith.constant 0 : index
    %c0_47 = arith.constant 0 : index
    %45 = vector.load %arg6[%c0_44, %c1_45, %c0_46, %c0_47] : memref<3x4x1x8xf32, #tpu.memory_space<vmem>>, vector<1x1x1x8xf32>
    %46 = vector.shape_cast %45 : vector<1x1x1x8xf32> to vector<1x8xf32>
    %47 = vector.broadcast %46 : vector<1x8xf32> to vector<16x8xf32>
    %48 = arith.addf %44, %47 : vector<16x8xf32>
    %c1_48 = arith.constant 1 : index
    %c1_49 = arith.constant 1 : index
    %c0_50 = arith.constant 0 : index
    %c0_51 = arith.constant 0 : index
    %49 = vector.load %arg5[%c1_48, %c1_49, %c0_50, %c0_51] : memref<3x4x32x8xf32, #tpu.memory_space<vmem>>, vector<1x1x32x8xf32>
    %50 = vector.shape_cast %49 : vector<1x1x32x8xf32> to vector<32x8xf32>
    %cst_52 = arith.constant dense<0.000000e+00> : vector<16x8xf32>
    %51 = tpu.matmul %1, %50, %cst_52 {dimension_numbers = #tpu.dot_dimension_numbers<[1], [0], [0], [1], [0, 0, 1, 1], [], []>} : vector<16x32xf32>, vector<32x8xf32>, vector<16x8xf32> -> vector<16x8xf32>
    %c1_53 = arith.constant 1 : index
    %c1_54 = arith.constant 1 : index
    %c0_55 = arith.constant 0 : index
    %c0_56 = arith.constant 0 : index
    %52 = vector.load %arg6[%c1_53, %c1_54, %c0_55, %c0_56] : memref<3x4x1x8xf32, #tpu.memory_space<vmem>>, vector<1x1x1x8xf32>
    %53 = vector.shape_cast %52 : vector<1x1x1x8xf32> to vector<1x8xf32>
    %54 = vector.broadcast %53 : vector<1x8xf32> to vector<16x8xf32>
    %55 = arith.addf %51, %54 : vector<16x8xf32>
    %c2_57 = arith.constant 2 : index
    %c1_58 = arith.constant 1 : index
    %c0_59 = arith.constant 0 : index
    %c0_60 = arith.constant 0 : index
    %56 = vector.load %arg5[%c2_57, %c1_58, %c0_59, %c0_60] : memref<3x4x32x8xf32, #tpu.memory_space<vmem>>, vector<1x1x32x8xf32>
    %57 = vector.shape_cast %56 : vector<1x1x32x8xf32> to vector<32x8xf32>
    %cst_61 = arith.constant dense<0.000000e+00> : vector<16x8xf32>
    %58 = tpu.matmul %2, %57, %cst_61 {dimension_numbers = #tpu.dot_dimension_numbers<[1], [0], [0], [1], [0, 0, 1, 1], [], []>} : vector<16x32xf32>, vector<32x8xf32>, vector<16x8xf32> -> vector<16x8xf32>
    %c2_62 = arith.constant 2 : index
    %c1_63 = arith.constant 1 : index
    %c0_64 = arith.constant 0 : index
    %c0_65 = arith.constant 0 : index
    %59 = vector.load %arg6[%c2_62, %c1_63, %c0_64, %c0_65] : memref<3x4x1x8xf32, #tpu.memory_space<vmem>>, vector<1x1x1x8xf32>
    %60 = vector.shape_cast %59 : vector<1x1x1x8xf32> to vector<1x8xf32>
    %61 = vector.broadcast %60 : vector<1x8xf32> to vector<16x8xf32>
    %62 = arith.addf %58, %61 : vector<16x8xf32>
    %cst_66 = arith.constant dense<0.000000e+00> : vector<16x16xf32>
    %63 = tpu.matmul %48, %55, %cst_66 {dimension_numbers = #tpu.dot_dimension_numbers<[1], [1], [0], [0], [0, 0, 1, 0], [], []>} : vector<16x8xf32>, vector<16x8xf32>, vector<16x16xf32> -> vector<16x16xf32>
    %64 = arith.addf %63, %3 : vector<16x16xf32>
    %cst_67 = arith.constant dense<0xFF800000> : vector<16xf32>
    %65 = vector.multi_reduction <maximumf>, %64, %cst_67 [1] : vector<16x16xf32> to vector<16xf32>
    %66 = vector.shape_cast %65 : vector<16xf32> to vector<16x1xf32>
    %67 = vector.broadcast %66 : vector<16x1xf32> to vector<16x16xf32>
    %68 = arith.subf %64, %67 : vector<16x16xf32>
    %69 = math.exp %68 : vector<16x16xf32>
    %cst_68 = arith.constant dense<0.000000e+00> : vector<16xf32>
    %70 = vector.multi_reduction <add>, %69, %cst_68 [1] : vector<16x16xf32> to vector<16xf32>
    %71 = vector.shape_cast %70 : vector<16xf32> to vector<16x1xf32>
    %72 = tpu.reciprocal %71 {approx = true} : vector<16x1xf32> -> vector<16x1xf32>
    %73 = vector.broadcast %72 : vector<16x1xf32> to vector<16x16xf32>
    %74 = arith.mulf %69, %73 : vector<16x16xf32>
    %cst_69 = arith.constant dense<0.000000e+00> : vector<16x8xf32>
    %75 = tpu.matmul %74, %62, %cst_69 {dimension_numbers = #tpu.dot_dimension_numbers<[1], [0], [0], [1], [0, 0, 1, 1], [], []>} : vector<16x16xf32>, vector<16x8xf32>, vector<16x8xf32> -> vector<16x8xf32>
    %c8 = arith.constant 8 : index
    %c0_70 = arith.constant 0 : index
    %76 = vector.load %arg7[%c8, %c0_70] : memref<32x32xf32, #tpu.memory_space<vmem>>, vector<8x32xf32>
    %cst_71 = arith.constant dense<0.000000e+00> : vector<16x32xf32>
    %77 = tpu.matmul %75, %76, %cst_71 {dimension_numbers = #tpu.dot_dimension_numbers<[1], [0], [0], [1], [0, 0, 1, 1], [], []>} : vector<16x8xf32>, vector<8x32xf32>, vector<16x32xf32> -> vector<16x32xf32>
    %78 = arith.addf %41, %77 : vector<16x32xf32>
    %c0_72 = arith.constant 0 : index
    %c2_73 = arith.constant 2 : index
    %c0_74 = arith.constant 0 : index
    %c0_75 = arith.constant 0 : index
    %79 = vector.load %arg5[%c0_72, %c2_73, %c0_74, %c0_75] : memref<3x4x32x8xf32, #tpu.memory_space<vmem>>, vector<1x1x32x8xf32>
    %80 = vector.shape_cast %79 : vector<1x1x32x8xf32> to vector<32x8xf32>
    %cst_76 = arith.constant dense<0.000000e+00> : vector<16x8xf32>
    %81 = tpu.matmul %0, %80, %cst_76 {dimension_numbers = #tpu.dot_dimension_numbers<[1], [0], [0], [1], [0, 0, 1, 1], [], []>} : vector<16x32xf32>, vector<32x8xf32>, vector<16x8xf32> -> vector<16x8xf32>
    %c0_77 = arith.constant 0 : index
    %c2_78 = arith.constant 2 : index
    %c0_79 = arith.constant 0 : index
    %c0_80 = arith.constant 0 : index
    %82 = vector.load %arg6[%c0_77, %c2_78, %c0_79, %c0_80] : memref<3x4x1x8xf32, #tpu.memory_space<vmem>>, vector<1x1x1x8xf32>
    %83 = vector.shape_cast %82 : vector<1x1x1x8xf32> to vector<1x8xf32>
    %84 = vector.broadcast %83 : vector<1x8xf32> to vector<16x8xf32>
    %85 = arith.addf %81, %84 : vector<16x8xf32>
    %c1_81 = arith.constant 1 : index
    %c2_82 = arith.constant 2 : index
    %c0_83 = arith.constant 0 : index
    %c0_84 = arith.constant 0 : index
    %86 = vector.load %arg5[%c1_81, %c2_82, %c0_83, %c0_84] : memref<3x4x32x8xf32, #tpu.memory_space<vmem>>, vector<1x1x32x8xf32>
    %87 = vector.shape_cast %86 : vector<1x1x32x8xf32> to vector<32x8xf32>
    %cst_85 = arith.constant dense<0.000000e+00> : vector<16x8xf32>
    %88 = tpu.matmul %1, %87, %cst_85 {dimension_numbers = #tpu.dot_dimension_numbers<[1], [0], [0], [1], [0, 0, 1, 1], [], []>} : vector<16x32xf32>, vector<32x8xf32>, vector<16x8xf32> -> vector<16x8xf32>
    %c1_86 = arith.constant 1 : index
    %c2_87 = arith.constant 2 : index
    %c0_88 = arith.constant 0 : index
    %c0_89 = arith.constant 0 : index
    %89 = vector.load %arg6[%c1_86, %c2_87, %c0_88, %c0_89] : memref<3x4x1x8xf32, #tpu.memory_space<vmem>>, vector<1x1x1x8xf32>
    %90 = vector.shape_cast %89 : vector<1x1x1x8xf32> to vector<1x8xf32>
    %91 = vector.broadcast %90 : vector<1x8xf32> to vector<16x8xf32>
    %92 = arith.addf %88, %91 : vector<16x8xf32>
    %c2_90 = arith.constant 2 : index
    %c2_91 = arith.constant 2 : index
    %c0_92 = arith.constant 0 : index
    %c0_93 = arith.constant 0 : index
    %93 = vector.load %arg5[%c2_90, %c2_91, %c0_92, %c0_93] : memref<3x4x32x8xf32, #tpu.memory_space<vmem>>, vector<1x1x32x8xf32>
    %94 = vector.shape_cast %93 : vector<1x1x32x8xf32> to vector<32x8xf32>
    %cst_94 = arith.constant dense<0.000000e+00> : vector<16x8xf32>
    %95 = tpu.matmul %2, %94, %cst_94 {dimension_numbers = #tpu.dot_dimension_numbers<[1], [0], [0], [1], [0, 0, 1, 1], [], []>} : vector<16x32xf32>, vector<32x8xf32>, vector<16x8xf32> -> vector<16x8xf32>
    %c2_95 = arith.constant 2 : index
    %c2_96 = arith.constant 2 : index
    %c0_97 = arith.constant 0 : index
    %c0_98 = arith.constant 0 : index
    %96 = vector.load %arg6[%c2_95, %c2_96, %c0_97, %c0_98] : memref<3x4x1x8xf32, #tpu.memory_space<vmem>>, vector<1x1x1x8xf32>
    %97 = vector.shape_cast %96 : vector<1x1x1x8xf32> to vector<1x8xf32>
    %98 = vector.broadcast %97 : vector<1x8xf32> to vector<16x8xf32>
    %99 = arith.addf %95, %98 : vector<16x8xf32>
    %cst_99 = arith.constant dense<0.000000e+00> : vector<16x16xf32>
    %100 = tpu.matmul %85, %92, %cst_99 {dimension_numbers = #tpu.dot_dimension_numbers<[1], [1], [0], [0], [0, 0, 1, 0], [], []>} : vector<16x8xf32>, vector<16x8xf32>, vector<16x16xf32> -> vector<16x16xf32>
    %101 = arith.addf %100, %3 : vector<16x16xf32>
    %cst_100 = arith.constant dense<0xFF800000> : vector<16xf32>
    %102 = vector.multi_reduction <maximumf>, %101, %cst_100 [1] : vector<16x16xf32> to vector<16xf32>
    %103 = vector.shape_cast %102 : vector<16xf32> to vector<16x1xf32>
    %104 = vector.broadcast %103 : vector<16x1xf32> to vector<16x16xf32>
    %105 = arith.subf %101, %104 : vector<16x16xf32>
    %106 = math.exp %105 : vector<16x16xf32>
    %cst_101 = arith.constant dense<0.000000e+00> : vector<16xf32>
    %107 = vector.multi_reduction <add>, %106, %cst_101 [1] : vector<16x16xf32> to vector<16xf32>
    %108 = vector.shape_cast %107 : vector<16xf32> to vector<16x1xf32>
    %109 = tpu.reciprocal %108 {approx = true} : vector<16x1xf32> -> vector<16x1xf32>
    %110 = vector.broadcast %109 : vector<16x1xf32> to vector<16x16xf32>
    %111 = arith.mulf %106, %110 : vector<16x16xf32>
    %cst_102 = arith.constant dense<0.000000e+00> : vector<16x8xf32>
    %112 = tpu.matmul %111, %99, %cst_102 {dimension_numbers = #tpu.dot_dimension_numbers<[1], [0], [0], [1], [0, 0, 1, 1], [], []>} : vector<16x16xf32>, vector<16x8xf32>, vector<16x8xf32> -> vector<16x8xf32>
    %c16 = arith.constant 16 : index
    %c0_103 = arith.constant 0 : index
    %113 = vector.load %arg7[%c16, %c0_103] : memref<32x32xf32, #tpu.memory_space<vmem>>, vector<8x32xf32>
    %cst_104 = arith.constant dense<0.000000e+00> : vector<16x32xf32>
    %114 = tpu.matmul %112, %113, %cst_104 {dimension_numbers = #tpu.dot_dimension_numbers<[1], [0], [0], [1], [0, 0, 1, 1], [], []>} : vector<16x8xf32>, vector<8x32xf32>, vector<16x32xf32> -> vector<16x32xf32>
    %115 = arith.addf %78, %114 : vector<16x32xf32>
    %c0_105 = arith.constant 0 : index
    %c3 = arith.constant 3 : index
    %c0_106 = arith.constant 0 : index
    %c0_107 = arith.constant 0 : index
    %116 = vector.load %arg5[%c0_105, %c3, %c0_106, %c0_107] : memref<3x4x32x8xf32, #tpu.memory_space<vmem>>, vector<1x1x32x8xf32>
    %117 = vector.shape_cast %116 : vector<1x1x32x8xf32> to vector<32x8xf32>
    %cst_108 = arith.constant dense<0.000000e+00> : vector<16x8xf32>
    %118 = tpu.matmul %0, %117, %cst_108 {dimension_numbers = #tpu.dot_dimension_numbers<[1], [0], [0], [1], [0, 0, 1, 1], [], []>} : vector<16x32xf32>, vector<32x8xf32>, vector<16x8xf32> -> vector<16x8xf32>
    %c0_109 = arith.constant 0 : index
    %c3_110 = arith.constant 3 : index
    %c0_111 = arith.constant 0 : index
    %c0_112 = arith.constant 0 : index
    %119 = vector.load %arg6[%c0_109, %c3_110, %c0_111, %c0_112] : memref<3x4x1x8xf32, #tpu.memory_space<vmem>>, vector<1x1x1x8xf32>
    %120 = vector.shape_cast %119 : vector<1x1x1x8xf32> to vector<1x8xf32>
    %121 = vector.broadcast %120 : vector<1x8xf32> to vector<16x8xf32>
    %122 = arith.addf %118, %121 : vector<16x8xf32>
    %c1_113 = arith.constant 1 : index
    %c3_114 = arith.constant 3 : index
    %c0_115 = arith.constant 0 : index
    %c0_116 = arith.constant 0 : index
    %123 = vector.load %arg5[%c1_113, %c3_114, %c0_115, %c0_116] : memref<3x4x32x8xf32, #tpu.memory_space<vmem>>, vector<1x1x32x8xf32>
    %124 = vector.shape_cast %123 : vector<1x1x32x8xf32> to vector<32x8xf32>
    %cst_117 = arith.constant dense<0.000000e+00> : vector<16x8xf32>
    %125 = tpu.matmul %1, %124, %cst_117 {dimension_numbers = #tpu.dot_dimension_numbers<[1], [0], [0], [1], [0, 0, 1, 1], [], []>} : vector<16x32xf32>, vector<32x8xf32>, vector<16x8xf32> -> vector<16x8xf32>
    %c1_118 = arith.constant 1 : index
    %c3_119 = arith.constant 3 : index
    %c0_120 = arith.constant 0 : index
    %c0_121 = arith.constant 0 : index
    %126 = vector.load %arg6[%c1_118, %c3_119, %c0_120, %c0_121] : memref<3x4x1x8xf32, #tpu.memory_space<vmem>>, vector<1x1x1x8xf32>
    %127 = vector.shape_cast %126 : vector<1x1x1x8xf32> to vector<1x8xf32>
    %128 = vector.broadcast %127 : vector<1x8xf32> to vector<16x8xf32>
    %129 = arith.addf %125, %128 : vector<16x8xf32>
    %c2_122 = arith.constant 2 : index
    %c3_123 = arith.constant 3 : index
    %c0_124 = arith.constant 0 : index
    %c0_125 = arith.constant 0 : index
    %130 = vector.load %arg5[%c2_122, %c3_123, %c0_124, %c0_125] : memref<3x4x32x8xf32, #tpu.memory_space<vmem>>, vector<1x1x32x8xf32>
    %131 = vector.shape_cast %130 : vector<1x1x32x8xf32> to vector<32x8xf32>
    %cst_126 = arith.constant dense<0.000000e+00> : vector<16x8xf32>
    %132 = tpu.matmul %2, %131, %cst_126 {dimension_numbers = #tpu.dot_dimension_numbers<[1], [0], [0], [1], [0, 0, 1, 1], [], []>} : vector<16x32xf32>, vector<32x8xf32>, vector<16x8xf32> -> vector<16x8xf32>
    %c2_127 = arith.constant 2 : index
    %c3_128 = arith.constant 3 : index
    %c0_129 = arith.constant 0 : index
    %c0_130 = arith.constant 0 : index
    %133 = vector.load %arg6[%c2_127, %c3_128, %c0_129, %c0_130] : memref<3x4x1x8xf32, #tpu.memory_space<vmem>>, vector<1x1x1x8xf32>
    %134 = vector.shape_cast %133 : vector<1x1x1x8xf32> to vector<1x8xf32>
    %135 = vector.broadcast %134 : vector<1x8xf32> to vector<16x8xf32>
    %136 = arith.addf %132, %135 : vector<16x8xf32>
    %cst_131 = arith.constant dense<0.000000e+00> : vector<16x16xf32>
    %137 = tpu.matmul %122, %129, %cst_131 {dimension_numbers = #tpu.dot_dimension_numbers<[1], [1], [0], [0], [0, 0, 1, 0], [], []>} : vector<16x8xf32>, vector<16x8xf32>, vector<16x16xf32> -> vector<16x16xf32>
    %138 = arith.addf %137, %3 : vector<16x16xf32>
    %cst_132 = arith.constant dense<0xFF800000> : vector<16xf32>
    %139 = vector.multi_reduction <maximumf>, %138, %cst_132 [1] : vector<16x16xf32> to vector<16xf32>
    %140 = vector.shape_cast %139 : vector<16xf32> to vector<16x1xf32>
    %141 = vector.broadcast %140 : vector<16x1xf32> to vector<16x16xf32>
    %142 = arith.subf %138, %141 : vector<16x16xf32>
    %143 = math.exp %142 : vector<16x16xf32>
    %cst_133 = arith.constant dense<0.000000e+00> : vector<16xf32>
    %144 = vector.multi_reduction <add>, %143, %cst_133 [1] : vector<16x16xf32> to vector<16xf32>
    %145 = vector.shape_cast %144 : vector<16xf32> to vector<16x1xf32>
    %146 = tpu.reciprocal %145 {approx = true} : vector<16x1xf32> -> vector<16x1xf32>
    %147 = vector.broadcast %146 : vector<16x1xf32> to vector<16x16xf32>
    %148 = arith.mulf %143, %147 : vector<16x16xf32>
    %cst_134 = arith.constant dense<0.000000e+00> : vector<16x8xf32>
    %149 = tpu.matmul %148, %136, %cst_134 {dimension_numbers = #tpu.dot_dimension_numbers<[1], [0], [0], [1], [0, 0, 1, 1], [], []>} : vector<16x16xf32>, vector<16x8xf32>, vector<16x8xf32> -> vector<16x8xf32>
    %c24 = arith.constant 24 : index
    %c0_135 = arith.constant 0 : index
    %150 = vector.load %arg7[%c24, %c0_135] : memref<32x32xf32, #tpu.memory_space<vmem>>, vector<8x32xf32>
    %cst_136 = arith.constant dense<0.000000e+00> : vector<16x32xf32>
    %151 = tpu.matmul %149, %150, %cst_136 {dimension_numbers = #tpu.dot_dimension_numbers<[1], [0], [0], [1], [0, 0, 1, 1], [], []>} : vector<16x8xf32>, vector<8x32xf32>, vector<16x32xf32> -> vector<16x32xf32>
    %152 = arith.addf %115, %151 : vector<16x32xf32>
    %c0_137 = arith.constant 0 : index
    %c0_138 = arith.constant 0 : index
    %153 = vector.load %arg8[%c0_137, %c0_138] : memref<1x32xf32, #tpu.memory_space<vmem>>, vector<1x32xf32>
    %154 = vector.broadcast %153 : vector<1x32xf32> to vector<16x32xf32>
    %155 = arith.addf %152, %154 : vector<16x32xf32>
    %c0_139 = arith.constant 0 : index
    %c0_140 = arith.constant 0 : index
    %156 = vector.load %arg9[%c0_139, %c0_140] : memref<16x32xf32, #tpu.memory_space<vmem>>, vector<16x32xf32>
    tpu.vector_store %arg9[%c0_139, %c0_140], %155 {strides = array<i32>} : memref<16x32xf32, #tpu.memory_space<vmem>>, vector<16x32xf32>,
    return
  }
  func.func @transform_0(%arg0: i32) -> (i32, i32) {
    %c0_i32 = arith.constant 0 : i32
    %c0_i32_0 = arith.constant 0 : i32
    %c0_i32_1 = arith.constant 0 : i32
    return %c0_i32, %c0_i32_0 : i32, i32
  }
  func.func @transform_1(%arg0: i32) -> (i32, i32) {
    %c0_i32 = arith.constant 0 : i32
    %c0_i32_0 = arith.constant 0 : i32
    %c0_i32_1 = arith.constant 0 : i32
    return %c0_i32, %c0_i32_0 : i32, i32
  }
  func.func @transform_2(%arg0: i32) -> (i32, i32) {
    %c0_i32 = arith.constant 0 : i32
    %c0_i32_0 = arith.constant 0 : i32
    %c0_i32_1 = arith.constant 0 : i32
    return %c0_i32, %c0_i32_0 : i32, i32
  }
  func.func @transform_3(%arg0: i32) -> (i32, i32) {
    %c0_i32 = arith.constant 0 : i32
    %c0_i32_0 = arith.constant 0 : i32
    %c0_i32_1 = arith.constant 0 : i32
    return %c0_i32, %c0_i32_0 : i32, i32
  }
  func.func @transform_4(%arg0: i32) -> (i32, i32, i32, i32) {
    %c0_i32 = arith.constant 0 : i32
    %c0_i32_0 = arith.constant 0 : i32
    %c0_i32_1 = arith.constant 0 : i32
    %c0_i32_2 = arith.constant 0 : i32
    %c0_i32_3 = arith.constant 0 : i32
    return %c0_i32, %c0_i32_0, %c0_i32_1, %c0_i32_2 : i32, i32, i32, i32
  }
  func.func @transform_5(%arg0: i32) -> (i32, i32, i32, i32) {
    %c0_i32 = arith.constant 0 : i32
    %c0_i32_0 = arith.constant 0 : i32
    %c0_i32_1 = arith.constant 0 : i32
    %c0_i32_2 = arith.constant 0 : i32
    %c0_i32_3 = arith.constant 0 : i32
    return %c0_i32, %c0_i32_0, %c0_i32_1, %c0_i32_2 : i32, i32, i32, i32
  }
  func.func @transform_6(%arg0: i32) -> (i32, i32) {
    %c0_i32 = arith.constant 0 : i32
    %c0_i32_0 = arith.constant 0 : i32
    %c0_i32_1 = arith.constant 0 : i32
    return %c0_i32, %c0_i32_0 : i32, i32
  }
  func.func @transform_7(%arg0: i32) -> (i32, i32) {
    %c0_i32 = arith.constant 0 : i32
    %c0_i32_0 = arith.constant 0 : i32
    %c0_i32_1 = arith.constant 0 : i32
    return %c0_i32, %c0_i32_0 : i32, i32
  }
  func.func @transform_8(%arg0: i32) -> (i32, i32) {
    %c0_i32 = arith.constant 0 : i32
    %c0_i32_0 = arith.constant 0 : i32
    %c0_i32_1 = arith.constant 0 : i32
    return %c0_i32, %c0_i32_0 : i32, i32
  }
}

</mosaic_0001>

<llo_original>
// kernel: tpu_custom_call.1
$region0: #{tpu_custom_call.1}
  #allocation0 [shape = 'u32[]', space=smem, size = 0x4, offset = 0x4, fixed_abs, tag = 'smem constant byte address 0x4 - core index']
  #allocation1 [shape = 'u32[72,128]{1,0:T(1,128)}', space=vmem, size = 0x9000, scoped, tag = 'internal scratch']
  %s0 = inlined_call_operand.vmem [shape: f32[16,32], index: 0, kind: input, shape index: {}]
  %s1 = inlined_call_operand.vmem [shape: f32[16,32], index: 1, kind: input, shape index: {}]
  %s2 = inlined_call_operand.vmem [shape: f32[16,32], index: 2, kind: input, shape index: {}]
  %s3 = inlined_call_operand.vmem [shape: f32[16,16], index: 3, kind: input, shape index: {}]
  %s4 = inlined_call_operand.vmem [shape: f32[3,4,32,8], index: 4, kind: input, shape index: {}]
  %s5 = inlined_call_operand.vmem [shape: f32[3,4,1,8], index: 5, kind: input, shape index: {}]
  %s6 = inlined_call_operand.vmem [shape: f32[32,32], index: 6, kind: input, shape index: {}]
  %s7 = inlined_call_operand.vmem [shape: f32[1,32], index: 7, kind: input, shape index: {}]
  %s8 = inlined_call_operand.hbm [shape: f32[16,32], index: 8, kind: output, shape index: {}]
  %s9 = sld [smem:[#allocation0]]
  $region42: #{tpu_custom_call.1} parent=0
    _
  %s11 = ssub.s32 1, %s9
  %s12 = scalar_select 0, %s11, %s9
  $region1: #{tpu_custom_call.1} parent=0
    #allocation2 [shape = 'u8[8192]{0}', space=vmem, size = 0x2000, scoped, tag = 'output window, operand 0, single buffered']
    #allocation3 [shape = 's32[1]{0}', space=sflag, size = 0x4, scoped, tag = 'scoped memory for tpu_custom_call.1']
    %13 = vsyncpa [#allocation3], 0
    // Predicated region
    $region2: #{tpu_custom_call.1} parent=1 // pred_check
      _
    $region3: #{tpu_custom_call.1} parent=1 // pred_check_branch
      %15 = sbr.rel (0) target = $region5
    $region4: #{tpu_custom_call.1} parent=1 // pred_region
      _
    $region5: #{tpu_custom_call.1} parent=1 // pred_fallthru
      _
    // Predicated region
    $region6: #{tpu_custom_call.1} parent=1 // pred_check
      _
    $region7: #{tpu_custom_call.1} parent=1 // pred_check_branch
      %17 = sbr.rel (0) target = $region9
    $region8: #{tpu_custom_call.1} parent=1 // pred_region
      _
    $region9: #{tpu_custom_call.1} parent=1 // pred_fallthru
      _
    // Predicated region
    $region10: #{tpu_custom_call.1} parent=1 // pred_check
      _
    $region11: #{tpu_custom_call.1} parent=1 // pred_check_branch
      %19 = sbr.rel (0) target = $region13
    $region12: #{tpu_custom_call.1} parent=1 // pred_region
      _
    $region13: #{tpu_custom_call.1} parent=1 // pred_fallthru
      _
    // Predicated region
    $region14: #{tpu_custom_call.1} parent=1 // pred_check
      _
    $region15: #{tpu_custom_call.1} parent=1 // pred_check_branch
      %21 = sbr.rel (0) target = $region17
    $region16: #{tpu_custom_call.1} parent=1 // pred_region
      _
    $region17: #{tpu_custom_call.1} parent=1 // pred_fallthru
      _
    // Predicated region
    $region18: #{tpu_custom_call.1} parent=1 // pred_check
      _
    $region19: #{tpu_custom_call.1} parent=1 // pred_check_branch
      %23 = sbr.rel (0) target = $region21
    $region20: #{tpu_custom_call.1} parent=1 // pred_region
      _
    $region21: #{tpu_custom_call.1} parent=1 // pred_fallthru
      _
    // Predicated region
    $region22: #{tpu_custom_call.1} parent=1 // pred_check
      _
    $region23: #{tpu_custom_call.1} parent=1 // pred_check_branch
      %25 = sbr.rel (0) target = $region25
    $region24: #{tpu_custom_call.1} parent=1 // pred_region
      _
    $region25: #{tpu_custom_call.1} parent=1 // pred_fallthru
      _
    // Predicated region
    $region26: #{tpu_custom_call.1} parent=1 // pred_check
      _
    $region27: #{tpu_custom_call.1} parent=1 // pred_check_branch
      %27 = sbr.rel (0) target = $region29
    $region28: #{tpu_custom_call.1} parent=1 // pred_region
      _
    $region29: #{tpu_custom_call.1} parent=1 // pred_fallthru
      _
    // Predicated region
    $region30: #{tpu_custom_call.1} parent=1 // pred_check
      _
    $region31: #{tpu_custom_call.1} parent=1 // pred_check_branch
      %29 = sbr.rel (0) target = $region33
    $region32: #{tpu_custom_call.1} parent=1 // pred_region
      _
    $region33: #{tpu_custom_call.1} parent=1 // pred_fallthru
      _
    %v30 = vld [vmem:[%s0] sm:$0xff]
    %v31 = vld [vmem:[%s0 + $0x8] sm:$0xff]
    %v32 = vld [vmem:[%s1] sm:$0xff]
    %v33 = vld [vmem:[%s1 + $0x8] sm:$0xff]
    %v34 = vld [vmem:[%s2] sm:$0xff]
    %v35 = vld [vmem:[%s2 + $0x8] sm:$0xff]
    %v36 = vld [vmem:[%s3] sm:$0xff]
    %v37 = vld [vmem:[%s3 + $0x8] sm:$0xff]
    %v38 = vld [vmem:[%s4] sm:$0xff]
    %v39 = vld [vmem:[%s4 + $0x8] sm:$0xff]
    %v40 = vld [vmem:[%s4 + $0x10] sm:$0xff]
    %v41 = vld [vmem:[%s4 + $0x18] sm:$0xff]
    %v42 = vld [vmem:[%s5] sm:$0x1]
    %v44 = vperm.slane %v42, 0
    %vm46 = vcmask 261120
    %v48 = vsel %vm46, %v30, 0
    %v51 = vsel %vm46, %v31, 0
    %53 = vmatpush.msra.mxu0 0.0
    %54 = vmatpush.msra.mxu0 0.0
    %55 = vmatpush.msra.mxu0 0.0
    %56 = vmatpush.msra.mxu0 0.0
    %57 = vmatpush.msra.mxu0 0.0
    %58 = vmatpush.msra.mxu0 0.0
    %59 = vmatpush.msra.mxu0 0.0
    %60 = vmatpush.msra.mxu0 0.0
    %61 = vmatpush.msra.mxu0 0.0
    %62 = vmatpush.msra.mxu0 0.0
    %63 = vmatpush.msra.mxu0 0.0
    %64 = vmatpush.msra.mxu0 0.0
    %65 = vmatpush.msra.mxu0 %v41
    %66 = vmatpush.msra.mxu0 %v40
    %67 = vmatpush.msra.mxu0 %v39
    %68 = vmatpush.msra.mxu0 %v38
    %69 = vmatmul.f32.gmra.mxu0 %v48
    %v70 = vpop.f32.mrf.mxu0
    %v71 = vadd.f32 %v44, %v70
    %72 = vmatmul.f32.gmra.mxu0 %v51
    %v73 = vpop.f32.mrf.mxu0
    %v74 = vadd.f32 %v44, %v73
    %75 = vdwg.mxu0
    %s76 = scalar_lea.vmem %s4, 128
    %v77 = vld [vmem:[%s76] sm:$0xff]
    %v78 = vld [vmem:[%s76 + $0x8] sm:$0xff]
    %v79 = vld [vmem:[%s76 + $0x10] sm:$0xff]
    %v80 = vld [vmem:[%s76 + $0x18] sm:$0xff]
    %s81 = scalar_lea.vmem %s5, 4
    %v82 = vld [vmem:[%s81] sm:$0x1]
    %v84 = vperm.slane %v82, 0
    %v87 = vsel %vm46, %v32, 0
    %v90 = vsel %vm46, %v33, 0
    %92 = vmatpush.msra.mxu0 0.0
    %93 = vmatpush.msra.mxu0 0.0
    %94 = vmatpush.msra.mxu0 0.0
    %95 = vmatpush.msra.mxu0 0.0
    %96 = vmatpush.msra.mxu0 0.0
    %97 = vmatpush.msra.mxu0 0.0
    %98 = vmatpush.msra.mxu0 0.0
    %99 = vmatpush.msra.mxu0 0.0
    %100 = vmatpush.msra.mxu0 0.0
    %101 = vmatpush.msra.mxu0 0.0
    %102 = vmatpush.msra.mxu0 0.0
    %103 = vmatpush.msra.mxu0 0.0
    %104 = vmatpush.msra.mxu0 %v80
    %105 = vmatpush.msra.mxu0 %v79
    %106 = vmatpush.msra.mxu0 %v78
    %107 = vmatpush.msra.mxu0 %v77
    %108 = vmatmul.f32.gmra.mxu0 %v87
    %v109 = vpop.f32.mrf.mxu0
    %v110 = vadd.f32 %v84, %v109
    %111 = vmatmul.f32.gmra.mxu0 %v90
    %v112 = vpop.f32.mrf.mxu0
    %v113 = vadd.f32 %v84, %v112
    %114 = vdwg.mxu0
    %s115 = scalar_lea.vmem %s4, 256
    %v116 = vld [vmem:[%s115] sm:$0xff]
    %v117 = vld [vmem:[%s115 + $0x8] sm:$0xff]
    %v118 = vld [vmem:[%s115 + $0x10] sm:$0xff]
    %v119 = vld [vmem:[%s115 + $0x18] sm:$0xff]
    %s120 = scalar_lea.vmem %s5, 8
    %v121 = vld [vmem:[%s120] sm:$0x1]
    %v123 = vperm.slane %v121, 0
    %v126 = vsel %vm46, %v34, 0
    %v129 = vsel %vm46, %v35, 0
    %131 = vmatpush.msra.mxu0 0.0
    %132 = vmatpush.msra.mxu0 0.0
    %133 = vmatpush.msra.mxu0 0.0
    %134 = vmatpush.msra.mxu0 0.0
    %135 = vmatpush.msra.mxu0 0.0
    %136 = vmatpush.msra.mxu0 0.0
    %137 = vmatpush.msra.mxu0 0.0
    %138 = vmatpush.msra.mxu0 0.0
    %139 = vmatpush.msra.mxu0 0.0
    %140 = vmatpush.msra.mxu0 0.0
    %141 = vmatpush.msra.mxu0 0.0
    %142 = vmatpush.msra.mxu0 0.0
    %143 = vmatpush.msra.mxu0 %v119
    %144 = vmatpush.msra.mxu0 %v118
    %145 = vmatpush.msra.mxu0 %v117
    %146 = vmatpush.msra.mxu0 %v116
    %147 = vmatmul.f32.gmra.mxu0 %v126
    %v148 = vpop.f32.mrf.mxu0
    %v149 = vadd.f32 %v123, %v148
    %150 = vmatmul.f32.gmra.mxu0 %v129
    %v151 = vpop.f32.mrf.mxu0
    %v152 = vadd.f32 %v123, %v151
    %153 = vdwg.mxu0
    %vm154 = vcmask 64512
    %v156 = vsel %vm154, %v71, 0
    %v159 = vsel %vm154, %v74, 0
    %v162 = vsel %vm154, %v110, 0
    %v165 = vsel %vm154, %v113, 0
    %167 = vmatpush.xpose.msra.mxu0 0.0
    %168 = vmatpush.xpose.msra.mxu0 0.0
    %169 = vmatpush.xpose.msra.mxu0 0.0
    %170 = vmatpush.xpose.msra.mxu0 0.0
    %171 = vmatpush.xpose.msra.mxu0 0.0
    %172 = vmatpush.xpose.msra.mxu0 0.0
    %173 = vmatpush.xpose.msra.mxu0 0.0
    %174 = vmatpush.xpose.msra.mxu0 0.0
    %175 = vmatpush.xpose.msra.mxu0 0.0
    %176 = vmatpush.xpose.msra.mxu0 0.0
    %177 = vmatpush.xpose.msra.mxu0 0.0
    %178 = vmatpush.xpose.msra.mxu0 0.0
    %179 = vmatpush.xpose.msra.mxu0 0.0
    %180 = vmatpush.xpose.msra.mxu0 0.0
    %181 = vmatpush.xpose.msra.mxu0 %v165
    %182 = vmatpush.xpose.msra.mxu0 %v162
    %183 = vmatmul.f32.gmra.mxu0 %v156
    %v184 = vpop.f32.mrf.mxu0
    %v185 = vadd.f32 %v36, %v184
    %186 = vmatmul.f32.gmra.mxu0 %v159
    %v187 = vpop.f32.mrf.mxu0
    %v188 = vadd.f32 %v37, %v187
    %189 = vdwg.mxu0
    %vm190 = vcmask 130048
    %v191 = vsel %vm190, %v185, -inf
    %192 = vmax.xlane.f32.xlu0 %v191
    %v193 = vpop.xlane.xlu0 %192
    %v194 = vsel %vm190, %v188, -inf
    %195 = vmax.xlane.f32.xlu0 %v194
    %v196 = vpop.xlane.xlu0 %195
    %v197 = vsub.f32 %v185, %v193
    %v198 = vsub.f32 %v188, %v196
    %v199 = vmul.f32 %v197, 1.442695
    %v200 = vpow.pop %v199
    %v201 = vmul.f32 %v198, 1.442695
    %v202 = vpow.pop %v201
    %v203 = vsel %vm190, %v200, 0.0
    %204 = vadd.xlane.f32.xlu0 %v203
    %v205 = vpop.xlane.xlu0 %204
    %v206 = vsel %vm190, %v202, 0.0
    %207 = vadd.xlane.f32.xlu0 %v206
    %v208 = vpop.xlane.xlu0 %207
    %v209 = vrcp.pop %v205
    %v210 = vrcp.pop %v208
    %v211 = vmul.f32 %v200, %v209
    %v212 = vmul.f32 %v202, %v210
    %v214 = vsel %vm190, %v211, 0
    %v217 = vsel %vm190, %v212, 0
    %219 = vmatpush.msra.mxu0 0.0
    %220 = vmatpush.msra.mxu0 0.0
    %221 = vmatpush.msra.mxu0 0.0
    %222 = vmatpush.msra.mxu0 0.0
    %223 = vmatpush.msra.mxu0 0.0
    %224 = vmatpush.msra.mxu0 0.0
    %225 = vmatpush.msra.mxu0 0.0
    %226 = vmatpush.msra.mxu0 0.0
    %227 = vmatpush.msra.mxu0 0.0
    %228 = vmatpush.msra.mxu0 0.0
    %229 = vmatpush.msra.mxu0 0.0
    %230 = vmatpush.msra.mxu0 0.0
    %231 = vmatpush.msra.mxu0 0.0
    %232 = vmatpush.msra.mxu0 0.0
    %233 = vmatpush.msra.mxu0 %v152
    %234 = vmatpush.msra.mxu0 %v149
    %235 = vmatmul.f32.gmra.mxu0 %v214
    %v236 = vpop.f32.mrf.mxu0
    %v237 = vadd.f32 0.0, %v236
    %238 = vmatmul.f32.gmra.mxu0 %v217
    %v239 = vpop.f32.mrf.mxu0
    %v240 = vadd.f32 0.0, %v239
    %241 = vdwg.mxu0
    %v242 = vld [vmem:[%s6] sm:$0xff]
    %s243 = scalar_lea.vmem %s4, 32
    %v244 = vld [vmem:[%s243] sm:$0xff]
    %v245 = vld [vmem:[%s243 + $0x8] sm:$0xff]
    %v246 = vld [vmem:[%s243 + $0x10] sm:$0xff]
    %v247 = vld [vmem:[%s243 + $0x18] sm:$0xff]
    %s248 = scalar_lea.vmem %s5, 1
    %v249 = vld [vmem:[%s248] sm:$0x1]
    %v251 = vperm.slane %v249, 0
    %253 = vmatpush.msra.mxu0 0.0
    %254 = vmatpush.msra.mxu0 0.0
    %255 = vmatpush.msra.mxu0 0.0
    %256 = vmatpush.msra.mxu0 0.0
    %257 = vmatpush.msra.mxu0 0.0
    %258 = vmatpush.msra.mxu0 0.0
    %259 = vmatpush.msra.mxu0 0.0
    %260 = vmatpush.msra.mxu0 0.0
    %261 = vmatpush.msra.mxu0 0.0
    %262 = vmatpush.msra.mxu0 0.0
    %263 = vmatpush.msra.mxu0 0.0
    %264 = vmatpush.msra.mxu0 0.0
    %265 = vmatpush.msra.mxu0 %v247
    %266 = vmatpush.msra.mxu0 %v246
    %267 = vmatpush.msra.mxu0 %v245
    %268 = vmatpush.msra.mxu0 %v244
    %269 = vmatmul.f32.gmra.mxu0 %v48
    %v270 = vpop.f32.mrf.mxu0
    %v271 = vadd.f32 %v251, %v270
    %272 = vmatmul.f32.gmra.mxu0 %v51
    %v273 = vpop.f32.mrf.mxu0
    %v274 = vadd.f32 %v251, %v273
    %275 = vdwg.mxu0
    %s276 = scalar_lea.vmem %s4, 160
    %v277 = vld [vmem:[%s276] sm:$0xff]
    %v278 = vld [vmem:[%s276 + $0x8] sm:$0xff]
    %v279 = vld [vmem:[%s276 + $0x10] sm:$0xff]
    %v280 = vld [vmem:[%s276 + $0x18] sm:$0xff]
    %s281 = scalar_lea.vmem %s5, 5
    %v282 = vld [vmem:[%s281] sm:$0x1]
    %v284 = vperm.slane %v282, 0
    %286 = vmatpush.msra.mxu0 0.0
    %287 = vmatpush.msra.mxu0 0.0
    %288 = vmatpush.msra.mxu0 0.0
    %289 = vmatpush.msra.mxu0 0.0
    %290 = vmatpush.msra.mxu0 0.0
    %291 = vmatpush.msra.mxu0 0.0
    %292 = vmatpush.msra.mxu0 0.0
    %293 = vmatpush.msra.mxu0 0.0
    %294 = vmatpush.msra.mxu0 0.0
    %295 = vmatpush.msra.mxu0 0.0
    %296 = vmatpush.msra.mxu0 0.0
    %297 = vmatpush.msra.mxu0 0.0
    %298 = vmatpush.msra.mxu0 %v280
    %299 = vmatpush.msra.mxu0 %v279
    %300 = vmatpush.msra.mxu0 %v278
    %301 = vmatpush.msra.mxu0 %v277
    %302 = vmatmul.f32.gmra.mxu0 %v87
    %v303 = vpop.f32.mrf.mxu0
    %v304 = vadd.f32 %v284, %v303
    %305 = vmatmul.f32.gmra.mxu0 %v90
    %v306 = vpop.f32.mrf.mxu0
    %v307 = vadd.f32 %v284, %v306
    %308 = vdwg.mxu0
    %s309 = scalar_lea.vmem %s4, 288
    %v310 = vld [vmem:[%s309] sm:$0xff]
    %v311 = vld [vmem:[%s309 + $0x8] sm:$0xff]
    %v312 = vld [vmem:[%s309 + $0x10] sm:$0xff]
    %v313 = vld [vmem:[%s309 + $0x18] sm:$0xff]
    %s314 = scalar_lea.vmem %s5, 9
    %v315 = vld [vmem:[%s314] sm:$0x1]
    %v317 = vperm.slane %v315, 0
    %319 = vmatpush.msra.mxu0 0.0
    %320 = vmatpush.msra.mxu0 0.0
    %321 = vmatpush.msra.mxu0 0.0
    %322 = vmatpush.msra.mxu0 0.0
    %323 = vmatpush.msra.mxu0 0.0
    %324 = vmatpush.msra.mxu0 0.0
    %325 = vmatpush.msra.mxu0 0.0
    %326 = vmatpush.msra.mxu0 0.0
    %327 = vmatpush.msra.mxu0 0.0
    %328 = vmatpush.msra.mxu0 0.0
    %329 = vmatpush.msra.mxu0 0.0
    %330 = vmatpush.msra.mxu0 0.0
    %331 = vmatpush.msra.mxu0 %v313
    %332 = vmatpush.msra.mxu0 %v312
    %333 = vmatpush.msra.mxu0 %v311
    %334 = vmatpush.msra.mxu0 %v310
    %335 = vmatmul.f32.gmra.mxu0 %v126
    %v336 = vpop.f32.mrf.mxu0
    %v337 = vadd.f32 %v317, %v336
    %338 = vmatmul.f32.gmra.mxu0 %v129
    %v339 = vpop.f32.mrf.mxu0
    %v340 = vadd.f32 %v317, %v339
    %341 = vdwg.mxu0
    %v343 = vsel %vm154, %v271, 0
    %v346 = vsel %vm154, %v274, 0
    %v349 = vsel %vm154, %v304, 0
    %v352 = vsel %vm154, %v307, 0
    %354 = vmatpush.xpose.msra.mxu0 0.0
    %355 = vmatpush.xpose.msra.mxu0 0.0
    %356 = vmatpush.xpose.msra.mxu0 0.0
    %357 = vmatpush.xpose.msra.mxu0 0.0
    %358 = vmatpush.xpose.msra.mxu0 0.0
    %359 = vmatpush.xpose.msra.mxu0 0.0
    %360 = vmatpush.xpose.msra.mxu0 0.0
    %361 = vmatpush.xpose.msra.mxu0 0.0
    %362 = vmatpush.xpose.msra.mxu0 0.0
    %363 = vmatpush.xpose.msra.mxu0 0.0
    %364 = vmatpush.xpose.msra.mxu0 0.0
    %365 = vmatpush.xpose.msra.mxu0 0.0
    %366 = vmatpush.xpose.msra.mxu0 0.0
    %367 = vmatpush.xpose.msra.mxu0 0.0
    %368 = vmatpush.xpose.msra.mxu0 %v352
    %369 = vmatpush.xpose.msra.mxu0 %v349
    %370 = vmatmul.f32.gmra.mxu0 %v343
    %v371 = vpop.f32.mrf.mxu0
    %v372 = vadd.f32 %v36, %v371
    %373 = vmatmul.f32.gmra.mxu0 %v346
    %v374 = vpop.f32.mrf.mxu0
    %v375 = vadd.f32 %v37, %v374
    %376 = vdwg.mxu0
    %v377 = vsel %vm190, %v372, -inf
    %378 = vmax.xlane.f32.xlu0 %v377
    %v379 = vpop.xlane.xlu0 %378
    %v380 = vsel %vm190, %v375, -inf
    %381 = vmax.xlane.f32.xlu0 %v380
    %v382 = vpop.xlane.xlu0 %381
    %v383 = vsub.f32 %v372, %v379
    %v384 = vsub.f32 %v375, %v382
    %v385 = vmul.f32 %v383, 1.442695
    %v386 = vpow.pop %v385
    %v387 = vmul.f32 %v384, 1.442695
    %v388 = vpow.pop %v387
    %v389 = vsel %vm190, %v386, 0.0
    %390 = vadd.xlane.f32.xlu0 %v389
    %v391 = vpop.xlane.xlu0 %390
    %v392 = vsel %vm190, %v388, 0.0
    %393 = vadd.xlane.f32.xlu0 %v392
    %v394 = vpop.xlane.xlu0 %393
    %v395 = vrcp.pop %v391
    %v396 = vrcp.pop %v394
    %v397 = vmul.f32 %v386, %v395
    %v398 = vmul.f32 %v388, %v396
    %v400 = vsel %vm190, %v397, 0
    %v403 = vsel %vm190, %v398, 0
    %405 = vmatpush.msra.mxu0 0.0
    %406 = vmatpush.msra.mxu0 0.0
    %407 = vmatpush.msra.mxu0 0.0
    %408 = vmatpush.msra.mxu0 0.0
    %409 = vmatpush.msra.mxu0 0.0
    %410 = vmatpush.msra.mxu0 0.0
    %411 = vmatpush.msra.mxu0 0.0
    %412 = vmatpush.msra.mxu0 0.0
    %413 = vmatpush.msra.mxu0 0.0
    %414 = vmatpush.msra.mxu0 0.0
    %415 = vmatpush.msra.mxu0 0.0
    %416 = vmatpush.msra.mxu0 0.0
    %417 = vmatpush.msra.mxu0 0.0
    %418 = vmatpush.msra.mxu0 0.0
    %419 = vmatpush.msra.mxu0 %v340
    %420 = vmatpush.msra.mxu0 %v337
    %421 = vmatmul.f32.gmra.mxu0 %v400
    %v422 = vpop.f32.mrf.mxu0
    %v423 = vadd.f32 0.0, %v422
    %424 = vmatmul.f32.gmra.mxu0 %v403
    %v425 = vpop.f32.mrf.mxu0
    %v426 = vadd.f32 0.0, %v425
    %427 = vdwg.mxu0
    %v428 = vld [vmem:[%s6 + $0x8] sm:$0xff]
    %v430 = vsel %vm154, %v423, 0
    %v433 = vsel %vm154, %v426, 0
    %435 = vmatpush.msra.mxu0 0.0
    %436 = vmatpush.msra.mxu0 0.0
    %437 = vmatpush.msra.mxu0 0.0
    %438 = vmatpush.msra.mxu0 0.0
    %439 = vmatpush.msra.mxu0 0.0
    %440 = vmatpush.msra.mxu0 0.0
    %441 = vmatpush.msra.mxu0 0.0
    %442 = vmatpush.msra.mxu0 0.0
    %443 = vmatpush.msra.mxu0 0.0
    %444 = vmatpush.msra.mxu0 0.0
    %445 = vmatpush.msra.mxu0 0.0
    %446 = vmatpush.msra.mxu0 0.0
    %447 = vmatpush.msra.mxu0 0.0
    %448 = vmatpush.msra.mxu0 0.0
    %449 = vmatpush.msra.mxu0 0.0
    %450 = vmatpush.msra.mxu0 %v428
    %451 = vmatmul.f32.gmra.mxu0 %v430
    %v452 = vpop.f32.mrf.mxu0
    %v453 = vadd.f32 0.0, %v452
    %454 = vmatmul.f32.gmra.mxu0 %v433
    %v455 = vpop.f32.mrf.mxu0
    %v456 = vadd.f32 0.0, %v455
    %457 = vdwg.mxu0
    %v459 = vsel %vm154, %v237, 0
    %v462 = vsel %vm154, %v240, 0
    %464 = vmatpush.msra.mxu0 0.0
    %465 = vmatpush.msra.mxu0 0.0
    %466 = vmatpush.msra.mxu0 0.0
    %467 = vmatpush.msra.mxu0 0.0
    %468 = vmatpush.msra.mxu0 0.0
    %469 = vmatpush.msra.mxu0 0.0
    %470 = vmatpush.msra.mxu0 0.0
    %471 = vmatpush.msra.mxu0 0.0
    %472 = vmatpush.msra.mxu0 0.0
    %473 = vmatpush.msra.mxu0 0.0
    %474 = vmatpush.msra.mxu0 0.0
    %475 = vmatpush.msra.mxu0 0.0
    %476 = vmatpush.msra.mxu0 0.0
    %477 = vmatpush.msra.mxu0 0.0
    %478 = vmatpush.msra.mxu0 0.0
    %479 = vmatpush.msra.mxu0 %v242
    %480 = vmatmul.f32.gmra.mxu0 %v459
    %v481 = vpop.f32.mrf.mxu0
    %v482 = vadd.f32 %v453, %v481
    %483 = vmatmul.f32.gmra.mxu0 %v462
    %v484 = vpop.f32.mrf.mxu0
    %v485 = vadd.f32 %v456, %v484
    %486 = vdwg.mxu0
    %s487 = scalar_lea.vmem %s4, 64
    %v488 = vld [vmem:[%s487] sm:$0xff]
    %v489 = vld [vmem:[%s487 + $0x8] sm:$0xff]
    %v490 = vld [vmem:[%s487 + $0x10] sm:$0xff]
    %v491 = vld [vmem:[%s487 + $0x18] sm:$0xff]
    %s492 = scalar_lea.vmem %s5, 2
    %v493 = vld [vmem:[%s492] sm:$0x1]
    %v495 = vperm.slane %v493, 0
    %497 = vmatpush.msra.mxu0 0.0
    %498 = vmatpush.msra.mxu0 0.0
    %499 = vmatpush.msra.mxu0 0.0
    %500 = vmatpush.msra.mxu0 0.0
    %501 = vmatpush.msra.mxu0 0.0
    %502 = vmatpush.msra.mxu0 0.0
    %503 = vmatpush.msra.mxu0 0.0
    %504 = vmatpush.msra.mxu0 0.0
    %505 = vmatpush.msra.mxu0 0.0
    %506 = vmatpush.msra.mxu0 0.0
    %507 = vmatpush.msra.mxu0 0.0
    %508 = vmatpush.msra.mxu0 0.0
    %509 = vmatpush.msra.mxu0 %v491
    %510 = vmatpush.msra.mxu0 %v490
    %511 = vmatpush.msra.mxu0 %v489
    %512 = vmatpush.msra.mxu0 %v488
    %513 = vmatmul.f32.gmra.mxu0 %v48
    %v514 = vpop.f32.mrf.mxu0
    %v515 = vadd.f32 %v495, %v514
    %516 = vmatmul.f32.gmra.mxu0 %v51
    %v517 = vpop.f32.mrf.mxu0
    %v518 = vadd.f32 %v495, %v517
    %519 = vdwg.mxu0
    %s520 = scalar_lea.vmem %s4, 192
    %v521 = vld [vmem:[%s520] sm:$0xff]
    %v522 = vld [vmem:[%s520 + $0x8] sm:$0xff]
    %v523 = vld [vmem:[%s520 + $0x10] sm:$0xff]
    %v524 = vld [vmem:[%s520 + $0x18] sm:$0xff]
    %s525 = scalar_lea.vmem %s5, 6
    %v526 = vld [vmem:[%s525] sm:$0x1]
    %v528 = vperm.slane %v526, 0
    %530 = vmatpush.msra.mxu0 0.0
    %531 = vmatpush.msra.mxu0 0.0
    %532 = vmatpush.msra.mxu0 0.0
    %533 = vmatpush.msra.mxu0 0.0
    %534 = vmatpush.msra.mxu0 0.0
    %535 = vmatpush.msra.mxu0 0.0
    %536 = vmatpush.msra.mxu0 0.0
    %537 = vmatpush.msra.mxu0 0.0
    %538 = vmatpush.msra.mxu0 0.0
    %539 = vmatpush.msra.mxu0 0.0
    %540 = vmatpush.msra.mxu0 0.0
    %541 = vmatpush.msra.mxu0 0.0
    %542 = vmatpush.msra.mxu0 %v524
    %543 = vmatpush.msra.mxu0 %v523
    %544 = vmatpush.msra.mxu0 %v522
    %545 = vmatpush.msra.mxu0 %v521
    %546 = vmatmul.f32.gmra.mxu0 %v87
    %v547 = vpop.f32.mrf.mxu0
    %v548 = vadd.f32 %v528, %v547
    %549 = vmatmul.f32.gmra.mxu0 %v90
    %v550 = vpop.f32.mrf.mxu0
    %v551 = vadd.f32 %v528, %v550
    %552 = vdwg.mxu0
    %s553 = scalar_lea.vmem %s4, 320
    %v554 = vld [vmem:[%s553] sm:$0xff]
    %v555 = vld [vmem:[%s553 + $0x8] sm:$0xff]
    %v556 = vld [vmem:[%s553 + $0x10] sm:$0xff]
    %v557 = vld [vmem:[%s553 + $0x18] sm:$0xff]
    %s558 = scalar_lea.vmem %s5, 10
    %v559 = vld [vmem:[%s558] sm:$0x1]
    %v561 = vperm.slane %v559, 0
    %563 = vmatpush.msra.mxu0 0.0
    %564 = vmatpush.msra.mxu0 0.0
    %565 = vmatpush.msra.mxu0 0.0
    %566 = vmatpush.msra.mxu0 0.0
    %567 = vmatpush.msra.mxu0 0.0
    %568 = vmatpush.msra.mxu0 0.0
    %569 = vmatpush.msra.mxu0 0.0
    %570 = vmatpush.msra.mxu0 0.0
    %571 = vmatpush.msra.mxu0 0.0
    %572 = vmatpush.msra.mxu0 0.0
    %573 = vmatpush.msra.mxu0 0.0
    %574 = vmatpush.msra.mxu0 0.0
    %575 = vmatpush.msra.mxu0 %v557
    %576 = vmatpush.msra.mxu0 %v556
    %577 = vmatpush.msra.mxu0 %v555
    %578 = vmatpush.msra.mxu0 %v554
    %579 = vmatmul.f32.gmra.mxu0 %v126
    %v580 = vpop.f32.mrf.mxu0
    %v581 = vadd.f32 %v561, %v580
    %582 = vmatmul.f32.gmra.mxu0 %v129
    %v583 = vpop.f32.mrf.mxu0
    %v584 = vadd.f32 %v561, %v583
    %585 = vdwg.mxu0
    %v587 = vsel %vm154, %v515, 0
    %v590 = vsel %vm154, %v518, 0
    %v593 = vsel %vm154, %v548, 0
    %v596 = vsel %vm154, %v551, 0
    %598 = vmatpush.xpose.msra.mxu0 0.0
    %599 = vmatpush.xpose.msra.mxu0 0.0
    %600 = vmatpush.xpose.msra.mxu0 0.0
    %601 = vmatpush.xpose.msra.mxu0 0.0
    %602 = vmatpush.xpose.msra.mxu0 0.0
    %603 = vmatpush.xpose.msra.mxu0 0.0
    %604 = vmatpush.xpose.msra.mxu0 0.0
    %605 = vmatpush.xpose.msra.mxu0 0.0
    %606 = vmatpush.xpose.msra.mxu0 0.0
    %607 = vmatpush.xpose.msra.mxu0 0.0
    %608 = vmatpush.xpose.msra.mxu0 0.0
    %609 = vmatpush.xpose.msra.mxu0 0.0
    %610 = vmatpush.xpose.msra.mxu0 0.0
    %611 = vmatpush.xpose.msra.mxu0 0.0
    %612 = vmatpush.xpose.msra.mxu0 %v596
    %613 = vmatpush.xpose.msra.mxu0 %v593
    %614 = vmatmul.f32.gmra.mxu0 %v587
    %v615 = vpop.f32.mrf.mxu0
    %v616 = vadd.f32 %v36, %v615
    %617 = vmatmul.f32.gmra.mxu0 %v590
    %v618 = vpop.f32.mrf.mxu0
    %v619 = vadd.f32 %v37, %v618
    %620 = vdwg.mxu0
    %v621 = vsel %vm190, %v616, -inf
    %622 = vmax.xlane.f32.xlu0 %v621
    %v623 = vpop.xlane.xlu0 %622
    %v624 = vsel %vm190, %v619, -inf
    %625 = vmax.xlane.f32.xlu0 %v624
    %v626 = vpop.xlane.xlu0 %625
    %v627 = vsub.f32 %v616, %v623
    %v628 = vsub.f32 %v619, %v626
    %v629 = vmul.f32 %v627, 1.442695
    %v630 = vpow.pop %v629
    %v631 = vmul.f32 %v628, 1.442695
    %v632 = vpow.pop %v631
    %v633 = vsel %vm190, %v630, 0.0
    %634 = vadd.xlane.f32.xlu0 %v633
    %v635 = vpop.xlane.xlu0 %634
    %v636 = vsel %vm190, %v632, 0.0
    %637 = vadd.xlane.f32.xlu0 %v636
    %v638 = vpop.xlane.xlu0 %637
    %v639 = vrcp.pop %v635
    %v640 = vrcp.pop %v638
    %v641 = vmul.f32 %v630, %v639
    %v642 = vmul.f32 %v632, %v640
    %v644 = vsel %vm190, %v641, 0
    %v647 = vsel %vm190, %v642, 0
    %649 = vmatpush.msra.mxu0 0.0
    %650 = vmatpush.msra.mxu0 0.0
    %651 = vmatpush.msra.mxu0 0.0
    %652 = vmatpush.msra.mxu0 0.0
    %653 = vmatpush.msra.mxu0 0.0
    %654 = vmatpush.msra.mxu0 0.0
    %655 = vmatpush.msra.mxu0 0.0
    %656 = vmatpush.msra.mxu0 0.0
    %657 = vmatpush.msra.mxu0 0.0
    %658 = vmatpush.msra.mxu0 0.0
    %659 = vmatpush.msra.mxu0 0.0
    %660 = vmatpush.msra.mxu0 0.0
    %661 = vmatpush.msra.mxu0 0.0
    %662 = vmatpush.msra.mxu0 0.0
    %663 = vmatpush.msra.mxu0 %v584
    %664 = vmatpush.msra.mxu0 %v581
    %665 = vmatmul.f32.gmra.mxu0 %v644
    %v666 = vpop.f32.mrf.mxu0
    %v667 = vadd.f32 0.0, %v666
    %668 = vmatmul.f32.gmra.mxu0 %v647
    %v669 = vpop.f32.mrf.mxu0
    %v670 = vadd.f32 0.0, %v669
    %671 = vdwg.mxu0
    %v672 = vld [vmem:[%s6 + $0x10] sm:$0xff]
    %v674 = vsel %vm154, %v667, 0
    %v677 = vsel %vm154, %v670, 0
    %679 = vmatpush.msra.mxu0 0.0
    %680 = vmatpush.msra.mxu0 0.0
    %681 = vmatpush.msra.mxu0 0.0
    %682 = vmatpush.msra.mxu0 0.0
    %683 = vmatpush.msra.mxu0 0.0
    %684 = vmatpush.msra.mxu0 0.0
    %685 = vmatpush.msra.mxu0 0.0
    %686 = vmatpush.msra.mxu0 0.0
    %687 = vmatpush.msra.mxu0 0.0
    %688 = vmatpush.msra.mxu0 0.0
    %689 = vmatpush.msra.mxu0 0.0
    %690 = vmatpush.msra.mxu0 0.0
    %691 = vmatpush.msra.mxu0 0.0
    %692 = vmatpush.msra.mxu0 0.0
    %693 = vmatpush.msra.mxu0 0.0
    %694 = vmatpush.msra.mxu0 %v672
    %695 = vmatmul.f32.gmra.mxu0 %v674
    %v696 = vpop.f32.mrf.mxu0
    %v697 = vadd.f32 0.0, %v696
    %698 = vmatmul.f32.gmra.mxu0 %v677
    %v699 = vpop.f32.mrf.mxu0
    %v700 = vadd.f32 0.0, %v699
    %701 = vdwg.mxu0
    %v702 = vadd.f32 %v482, %v697
    %v703 = vadd.f32 %v485, %v700
    %s704 = scalar_lea.vmem %s4, 96
    %v705 = vld [vmem:[%s704] sm:$0xff]
    %v706 = vld [vmem:[%s704 + $0x8] sm:$0xff]
    %v707 = vld [vmem:[%s704 + $0x10] sm:$0xff]
    %v708 = vld [vmem:[%s704 + $0x18] sm:$0xff]
    %s709 = scalar_lea.vmem %s5, 3
    %v710 = vld [vmem:[%s709] sm:$0x1]
    %v712 = vperm.slane %v710, 0
    %714 = vmatpush.msra.mxu0 0.0
    %715 = vmatpush.msra.mxu0 0.0
    %716 = vmatpush.msra.mxu0 0.0
    %717 = vmatpush.msra.mxu0 0.0
    %718 = vmatpush.msra.mxu0 0.0
    %719 = vmatpush.msra.mxu0 0.0
    %720 = vmatpush.msra.mxu0 0.0
    %721 = vmatpush.msra.mxu0 0.0
    %722 = vmatpush.msra.mxu0 0.0
    %723 = vmatpush.msra.mxu0 0.0
    %724 = vmatpush.msra.mxu0 0.0
    %725 = vmatpush.msra.mxu0 0.0
    %726 = vmatpush.msra.mxu0 %v708
    %727 = vmatpush.msra.mxu0 %v707
    %728 = vmatpush.msra.mxu0 %v706
    %729 = vmatpush.msra.mxu0 %v705
    %730 = vmatmul.f32.gmra.mxu0 %v48
    %v731 = vpop.f32.mrf.mxu0
    %v732 = vadd.f32 %v712, %v731
    %733 = vmatmul.f32.gmra.mxu0 %v51
    %v734 = vpop.f32.mrf.mxu0
    %v735 = vadd.f32 %v712, %v734
    %736 = vdwg.mxu0
    %s737 = scalar_lea.vmem %s4, 224
    %v738 = vld [vmem:[%s737] sm:$0xff]
    %v739 = vld [vmem:[%s737 + $0x8] sm:$0xff]
    %v740 = vld [vmem:[%s737 + $0x10] sm:$0xff]
    %v741 = vld [vmem:[%s737 + $0x18] sm:$0xff]
    %s742 = scalar_lea.vmem %s5, 7
    %v743 = vld [vmem:[%s742] sm:$0x1]
    %v745 = vperm.slane %v743, 0
    %747 = vmatpush.msra.mxu0 0.0
    %748 = vmatpush.msra.mxu0 0.0
    %749 = vmatpush.msra.mxu0 0.0
    %750 = vmatpush.msra.mxu0 0.0
    %751 = vmatpush.msra.mxu0 0.0
    %752 = vmatpush.msra.mxu0 0.0
    %753 = vmatpush.msra.mxu0 0.0
    %754 = vmatpush.msra.mxu0 0.0
    %755 = vmatpush.msra.mxu0 0.0
    %756 = vmatpush.msra.mxu0 0.0
    %757 = vmatpush.msra.mxu0 0.0
    %758 = vmatpush.msra.mxu0 0.0
    %759 = vmatpush.msra.mxu0 %v741
    %760 = vmatpush.msra.mxu0 %v740
    %761 = vmatpush.msra.mxu0 %v739
    %762 = vmatpush.msra.mxu0 %v738
    %763 = vmatmul.f32.gmra.mxu0 %v87
    %v764 = vpop.f32.mrf.mxu0
    %v765 = vadd.f32 %v745, %v764
    %766 = vmatmul.f32.gmra.mxu0 %v90
    %v767 = vpop.f32.mrf.mxu0
    %v768 = vadd.f32 %v745, %v767
    %769 = vdwg.mxu0
    %s770 = scalar_lea.vmem %s4, 352
    %v771 = vld [vmem:[%s770] sm:$0xff]
    %v772 = vld [vmem:[%s770 + $0x8] sm:$0xff]
    %v773 = vld [vmem:[%s770 + $0x10] sm:$0xff]
    %v774 = vld [vmem:[%s770 + $0x18] sm:$0xff]
    %s775 = scalar_lea.vmem %s5, 11
    %v776 = vld [vmem:[%s775] sm:$0x1]
    %v778 = vperm.slane %v776, 0
    %780 = vmatpush.msra.mxu0 0.0
    %781 = vmatpush.msra.mxu0 0.0
    %782 = vmatpush.msra.mxu0 0.0
    %783 = vmatpush.msra.mxu0 0.0
    %784 = vmatpush.msra.mxu0 0.0
    %785 = vmatpush.msra.mxu0 0.0
    %786 = vmatpush.msra.mxu0 0.0
    %787 = vmatpush.msra.mxu0 0.0
    %788 = vmatpush.msra.mxu0 0.0
    %789 = vmatpush.msra.mxu0 0.0
    %790 = vmatpush.msra.mxu0 0.0
    %791 = vmatpush.msra.mxu0 0.0
    %792 = vmatpush.msra.mxu0 %v774
    %793 = vmatpush.msra.mxu0 %v773
    %794 = vmatpush.msra.mxu0 %v772
    %795 = vmatpush.msra.mxu0 %v771
    %796 = vmatmul.f32.gmra.mxu0 %v126
    %v797 = vpop.f32.mrf.mxu0
    %v798 = vadd.f32 %v778, %v797
    %799 = vmatmul.f32.gmra.mxu0 %v129
    %v800 = vpop.f32.mrf.mxu0
    %v801 = vadd.f32 %v778, %v800
    %802 = vdwg.mxu0
    %v804 = vsel %vm154, %v732, 0
    %v807 = vsel %vm154, %v735, 0
    %v810 = vsel %vm154, %v765, 0
    %v813 = vsel %vm154, %v768, 0
    %815 = vmatpush.xpose.msra.mxu0 0.0
    %816 = vmatpush.xpose.msra.mxu0 0.0
    %817 = vmatpush.xpose.msra.mxu0 0.0
    %818 = vmatpush.xpose.msra.mxu0 0.0
    %819 = vmatpush.xpose.msra.mxu0 0.0
    %820 = vmatpush.xpose.msra.mxu0 0.0
    %821 = vmatpush.xpose.msra.mxu0 0.0
    %822 = vmatpush.xpose.msra.mxu0 0.0
    %823 = vmatpush.xpose.msra.mxu0 0.0
    %824 = vmatpush.xpose.msra.mxu0 0.0
    %825 = vmatpush.xpose.msra.mxu0 0.0
    %826 = vmatpush.xpose.msra.mxu0 0.0
    %827 = vmatpush.xpose.msra.mxu0 0.0
    %828 = vmatpush.xpose.msra.mxu0 0.0
    %829 = vmatpush.xpose.msra.mxu0 %v813
    %830 = vmatpush.xpose.msra.mxu0 %v810
    %831 = vmatmul.f32.gmra.mxu0 %v804
    %v832 = vpop.f32.mrf.mxu0
    %v833 = vadd.f32 %v36, %v832
    %834 = vmatmul.f32.gmra.mxu0 %v807
    %v835 = vpop.f32.mrf.mxu0
    %v836 = vadd.f32 %v37, %v835
    %837 = vdwg.mxu0
    %v838 = vsel %vm190, %v833, -inf
    %839 = vmax.xlane.f32.xlu0 %v838
    %v840 = vpop.xlane.xlu0 %839
    %v841 = vsel %vm190, %v836, -inf
    %842 = vmax.xlane.f32.xlu0 %v841
    %v843 = vpop.xlane.xlu0 %842
    %v844 = vsub.f32 %v833, %v840
    %v845 = vsub.f32 %v836, %v843
    %v846 = vmul.f32 %v844, 1.442695
    %v847 = vpow.pop %v846
    %v848 = vmul.f32 %v845, 1.442695
    %v849 = vpow.pop %v848
    %v850 = vsel %vm190, %v847, 0.0
    %851 = vadd.xlane.f32.xlu0 %v850
    %v852 = vpop.xlane.xlu0 %851
    %v853 = vsel %vm190, %v849, 0.0
    %854 = vadd.xlane.f32.xlu0 %v853
    %v855 = vpop.xlane.xlu0 %854
    %v856 = vrcp.pop %v852
    %v857 = vrcp.pop %v855
    %v858 = vmul.f32 %v847, %v856
    %v859 = vmul.f32 %v849, %v857
    %v861 = vsel %vm190, %v858, 0
    %v864 = vsel %vm190, %v859, 0
    %866 = vmatpush.msra.mxu0 0.0
    %867 = vmatpush.msra.mxu0 0.0
    %868 = vmatpush.msra.mxu0 0.0
    %869 = vmatpush.msra.mxu0 0.0
    %870 = vmatpush.msra.mxu0 0.0
    %871 = vmatpush.msra.mxu0 0.0
    %872 = vmatpush.msra.mxu0 0.0
    %873 = vmatpush.msra.mxu0 0.0
    %874 = vmatpush.msra.mxu0 0.0
    %875 = vmatpush.msra.mxu0 0.0
    %876 = vmatpush.msra.mxu0 0.0
    %877 = vmatpush.msra.mxu0 0.0
    %878 = vmatpush.msra.mxu0 0.0
    %879 = vmatpush.msra.mxu0 0.0
    %880 = vmatpush.msra.mxu0 %v801
    %881 = vmatpush.msra.mxu0 %v798
    %882 = vmatmul.f32.gmra.mxu0 %v861
    %v883 = vpop.f32.mrf.mxu0
    %v884 = vadd.f32 0.0, %v883
    %885 = vmatmul.f32.gmra.mxu0 %v864
    %v886 = vpop.f32.mrf.mxu0
    %v887 = vadd.f32 0.0, %v886
    %888 = vdwg.mxu0
    %v889 = vld [vmem:[%s6 + $0x18] sm:$0xff]
    %v891 = vsel %vm154, %v884, 0
    %v894 = vsel %vm154, %v887, 0
    %896 = vmatpush.msra.mxu0 0.0
    %897 = vmatpush.msra.mxu0 0.0
    %898 = vmatpush.msra.mxu0 0.0
    %899 = vmatpush.msra.mxu0 0.0
    %900 = vmatpush.msra.mxu0 0.0
    %901 = vmatpush.msra.mxu0 0.0
    %902 = vmatpush.msra.mxu0 0.0
    %903 = vmatpush.msra.mxu0 0.0
    %904 = vmatpush.msra.mxu0 0.0
    %905 = vmatpush.msra.mxu0 0.0
    %906 = vmatpush.msra.mxu0 0.0
    %907 = vmatpush.msra.mxu0 0.0
    %908 = vmatpush.msra.mxu0 0.0
    %909 = vmatpush.msra.mxu0 0.0
    %910 = vmatpush.msra.mxu0 0.0
    %911 = vmatpush.msra.mxu0 %v889
    %912 = vmatmul.f32.gmra.mxu0 %v891
    %v913 = vpop.f32.mrf.mxu0
    %v914 = vadd.f32 0.0, %v913
    %915 = vmatmul.f32.gmra.mxu0 %v894
    %v916 = vpop.f32.mrf.mxu0
    %v917 = vadd.f32 0.0, %v916
    %918 = vdwg.mxu0
    %v919 = vadd.f32 %v702, %v914
    %v920 = vadd.f32 %v703, %v917
    %v921 = vld [vmem:[%s7] sm:$0x1]
    %v923 = vperm.slane %v921, 0
    %v925 = vadd.f32 %v919, %v923
    %v926 = vadd.f32 %v920, %v923
    %927 = vst.msk [vmem:[#allocation2] sm:$0xff] %vm46, %v925
    %928 = vst.msk [vmem:[#allocation2 + $0x8] sm:$0xff] %vm46, %v926
    // Predicated region
    $region34: #{tpu_custom_call.1} parent=1 // pred_check
      _
    $region35: #{tpu_custom_call.1} parent=1 // pred_check_branch
      %930 = sbr.rel (0) target = $region37
    $region36: #{tpu_custom_call.1} parent=1 // pred_region
      %932 = vsyncadd [#allocation3], 0
      %s933 = sshll.u32 [#allocation2], 4
      %s934 = int_to_ptr.vmem [resolvable:$true] %s933
      %s935 = sshll.u32 %s8, 4
      %s936 = int_to_ptr.hbm [resolvable:$true] %s935
      %941 = dma.vmem_to_hbm [thread:$0]  %s934, 256, %s936, [#allocation3], 128, 128, 8
    $region37: #{tpu_custom_call.1} parent=1 // pred_fallthru
      _
    // Predicated region
    $region38: #{tpu_custom_call.1} parent=1 // pred_check
      _
    $region39: #{tpu_custom_call.1} parent=1 // pred_check_branch
      %943 = sbr.rel (0) target = $region41
    $region40: #{tpu_custom_call.1} parent=1 // pred_region
      %945 = dma.done [#allocation3], 256
    $region41: #{tpu_custom_call.1} parent=1 // pred_fallthru
      _
    %946 = vsyncpa [#allocation3], 1

</llo_original>
